<compile_context>
chip_gen: v7x
topology: tpu7x:2x2x1
jax: 0.10.0
libtpu: 0.0.40
codegen_flags: <defaults>
</compile_context>

<pallas_src>
import jax
import jax.numpy as jnp
from jax.experimental import pallas as pl
from jax.experimental.pallas import tpu as pltpu


# Logical layer widths of the PyTorch module and their lane-padded versions.
LOGICAL_WIDTHS = (500, 250, 25, 3)
PADDED_WIDTHS = (512, 256, 32, 128)   # 500->512, 250->256, 25->32, 3->128 (lane-dense out)
NUM_CLASSES = 3
MIN_ROW_TILE = 16                      # bf16 intermediates pack (16, 128) vregs


def _round_up(n, m):
    return ((n + m - 1) // m) * m


def _cdiv(a, b):
    return -(-a // b)


def mlp_kernel(x_ref, w1_ref, b1_ref, w2_ref, b2_ref, w3_ref, b3_ref,
               w4_ref, b4_ref, out_ref):
    # Layers 1-2 feed bf16 operands to the MXU (f32 accumulation).  Layers 3-4
    # are tiny (K=256, K=32) so they stay f32 end-to-end: no bf16 pack/unpack
    # VALU work (v5e has no native bf16 VPU path) and negligible MXU cost.
    h = x_ref[...].astype(jnp.bfloat16)

    h = jnp.dot(h, w1_ref[...], preferred_element_type=jnp.float32)
    h = jnp.maximum(h + b1_ref[...], 0.0).astype(jnp.bfloat16)

    h = jnp.dot(h, w2_ref[...], preferred_element_type=jnp.float32)
    h = jnp.maximum(h + b2_ref[...], 0.0)                     # stays f32

    h = jnp.dot(h, w3_ref[...], preferred_element_type=jnp.float32)
    h = jnp.maximum(h + b3_ref[...], 0.0)                     # stays f32

    logits = jnp.dot(h, w4_ref[...], preferred_element_type=jnp.float32) + b4_ref[...]

    # Mask the zero-padded logit columns (3..127) to a huge negative so they
    # contribute nothing to the max / logsumexp; then numerically stable
    # log_softmax over dim=1.
    col = jax.lax.broadcasted_iota(jnp.int32, logits.shape, dimension=1)
    logits = jnp.where(col < NUM_CLASSES, logits, -1e30)
    m = jnp.max(logits, axis=1, keepdims=True)
    shifted = logits - m
    lse = jnp.log(jnp.sum(jnp.exp(shifted), axis=1, keepdims=True))
    out_ref[...] = (shifted - lse).astype(out_ref.dtype)


def _cost_estimate(padded_b, d_in, x_itemsize):
    d1, d2, d3, d4 = PADDED_WIDTHS
    flops = 2 * padded_b * (d_in * d1 + d1 * d2 + d2 * d3 + d3 * d4)
    transcendentals = padded_b * (d4 + 1)           # exp per (padded) class + log per row
    weight_bytes = (2 * (d_in * d1 + d1 * d2)       # bf16 w1, w2
                    + 4 * (d2 * d3 + d3 * d4)       # f32 w3, w4
                    + 4 * (d1 + d2 + d3 + d4))      # f32 biases
    bytes_accessed = (weight_bytes
                      + x_itemsize * padded_b * d_in
                      + 4 * padded_b * d4)
    return pl.CostEstimate(flops=flops, transcendentals=transcendentals,
                           bytes_accessed=bytes_accessed)


def basic_nnet_forward(x, params, *, block_b=512):
    """x: (B, input_size) f32 or bf16; params: padded weights (in,out) / biases (1,out)."""
    B, d_in = x.shape
    d_out = PADDED_WIDTHS[-1]

    weight_args = (params["w1"], params["b1"], params["w2"], params["b2"],
                   params["w3"], params["b3"], params["w4"], params["b4"])
    # Whole-array, VMEM-resident (grid-invariant) specs for the small weights/biases.
    vmem_spec = pl.BlockSpec(memory_space=pltpu.MemorySpace.VMEM)

    padded_b = _round_up(max(B, 1), MIN_ROW_TILE)

    if padded_b < 2 * MIN_ROW_TILE:
        # Tiny / latency-bound inference path: single invocation, no grid
        # bookkeeping, everything whole-array in VMEM.
        xp = jnp.pad(x, ((0, padded_b - B), (0, 0))) if padded_b != B else x
        out = pl.pallas_call(
            mlp_kernel,
            out_shape=jax.ShapeDtypeStruct((padded_b, d_out), jnp.float32),
            in_specs=[vmem_spec] * 9,
            out_specs=vmem_spec,
            cost_estimate=_cost_estimate(padded_b, d_in, x.dtype.itemsize),
        )(xp, *weight_args)
        return out[:B, :NUM_CLASSES]

    # Gridded path: tile the batch.  Always >= 2 grid steps so the "parallel"
    # axis can shard across both TensorCores on v7x (negligible extra cost on
    # single-TC v5e/v6e).
    n_steps = max(2, _cdiv(padded_b, block_b))
    tb = _round_up(_cdiv(padded_b, n_steps), MIN_ROW_TILE)
    padded_b = tb * n_steps
    xp = jnp.pad(x, ((0, padded_b - B), (0, 0))) if padded_b != B else x

    out = pl.pallas_call(
        mlp_kernel,
        out_shape=jax.ShapeDtypeStruct((padded_b, d_out), jnp.float32),
        grid=(n_steps,),
        in_specs=[pl.BlockSpec((tb, d_in), lambda i: (i, 0))] + [vmem_spec] * 8,
        out_specs=pl.BlockSpec((tb, d_out), lambda i: (i, 0)),
        compiler_params=pltpu.CompilerParams(
            dimension_semantics=("parallel",)),
        cost_estimate=_cost_estimate(padded_b, d_in, x.dtype.itemsize),
    )(xp, *weight_args)
    return out[:B, :NUM_CLASSES]


def init_params(key, input_size):
    """PyTorch nn.Linear-style init U(-1/sqrt(fan_in), 1/sqrt(fan_in)) at the
    logical widths, zero-padded to lane-friendly widths.  Weights are (in, out)
    so the kernel computes x @ W (== torch's x @ W.T).  Big weights (w1, w2)
    are bf16; small weights (w3, w4) and all biases stay f32."""
    logical_in = (input_size,) + LOGICAL_WIDTHS[:-1]
    logical_out = LOGICAL_WIDTHS
    padded_in = (input_size,) + PADDED_WIDTHS[:-1]
    padded_out = PADDED_WIDTHS
    weight_dtypes = (jnp.bfloat16, jnp.bfloat16, jnp.float32, jnp.float32)

    params = {}
    for idx in range(4):
        key, kw, kb = jax.random.split(key, 3)
        fan_in, fan_out = logical_in[idx], logical_out[idx]
        p_in, p_out = padded_in[idx], padded_out[idx]
        bound = 1.0 / float(fan_in) ** 0.5
        w = jax.random.uniform(kw, (fan_in, fan_out), jnp.float32,
                               minval=-bound, maxval=bound)
        b = jax.random.uniform(kb, (1, fan_out), jnp.float32,
                               minval=-bound, maxval=bound)
        w_pad = jnp.zeros((p_in, p_out), jnp.float32).at[:fan_in, :fan_out].set(w)
        b_pad = jnp.zeros((1, p_out), jnp.float32).at[:, :fan_out].set(b)
        params[f"w{idx + 1}"] = w_pad.astype(weight_dtypes[idx])
        params[f"b{idx + 1}"] = b_pad                      # f32 bias
    return params


def reference_forward(x, params):
    """Pure-JAX reference mirroring the kernel's mixed bf16/f32 math."""
    h = x.astype(jnp.bfloat16)
    h = jnp.dot(h, params["w1"], preferred_element_type=jnp.float32)
    h = jnp.maximum(h + params["b1"], 0.0).astype(jnp.bfloat16)
    h = jnp.dot(h, params["w2"], preferred_element_type=jnp.float32)
    h = jnp.maximum(h + params["b2"], 0.0)
    h = jnp.dot(h, params["w3"], preferred_element_type=jnp.float32)
    h = jnp.maximum(h + params["b3"], 0.0)
    logits = (jnp.dot(h, params["w4"], preferred_element_type=jnp.float32)
              + params["b4"])[:, :NUM_CLASSES]
    return jax.nn.log_softmax(logits, axis=1)


if __name__ == "__main__":
    key = jax.random.PRNGKey(0)
    key, kx_small, kx_large = jax.random.split(key, 3)

    input_size = 32
    params = init_params(key, input_size)

    # Small batch exercises the gridless (latency) path.
    x_small = jax.random.normal(kx_small, (8, input_size), jnp.float32)
    out_small = jax.block_until_ready(basic_nnet_forward(x_small, params))
    ref_small = reference_forward(x_small, params)
    assert out_small.shape == (8, NUM_CLASSES)
    assert bool(jnp.all(jnp.isfinite(out_small)))
    assert jnp.allclose(out_small, ref_small, atol=2e-2, rtol=2e-2), \
        float(jnp.max(jnp.abs(out_small - ref_small)))

    # Larger batch exercises the gridded (>= 2 step, "parallel") path.
    x_large = jax.random.normal(kx_large, (40, input_size), jnp.float32)
    out_large = jax.block_until_ready(basic_nnet_forward(x_large, params))
    ref_large = reference_forward(x_large, params)
    assert out_large.shape == (40, NUM_CLASSES)
    assert bool(jnp.all(jnp.isfinite(out_large)))
    assert jnp.allclose(out_large, ref_large, atol=2e-2, rtol=2e-2), \
        float(jnp.max(jnp.abs(out_large - ref_large)))

    print("KERNEL_OK")
</pallas_src>

<mosaic_0001>
module attributes {stable_mosaic.version = 11 : i64} {
  func.func @mlp_kernel(%arg0: memref<16x32xf32, #tpu.memory_space<vmem>>, %arg1: memref<32x512xbf16, #tpu.memory_space<vmem>>, %arg2: memref<1x512xf32, #tpu.memory_space<vmem>>, %arg3: memref<512x256xbf16, #tpu.memory_space<vmem>>, %arg4: memref<1x256xf32, #tpu.memory_space<vmem>>, %arg5: memref<256x32xf32, #tpu.memory_space<vmem>>, %arg6: memref<1x32xf32, #tpu.memory_space<vmem>>, %arg7: memref<32x128xf32, #tpu.memory_space<vmem>>, %arg8: memref<1x128xf32, #tpu.memory_space<vmem>>, %arg9: memref<16x128xf32, #tpu.memory_space<vmem>>) attributes {dimension_semantics = [], scalar_prefetch = 0 : i64, scratch_operands = 0 : i64, tpu.core_type = #tpu.core_type<tc>} {
    %c0 = arith.constant 0 : index
    %c0_0 = arith.constant 0 : index
    %0 = vector.load %arg0[%c0, %c0_0] : memref<16x32xf32, #tpu.memory_space<vmem>>, vector<16x32xf32>
    %1 = arith.truncf %0 : vector<16x32xf32> to vector<16x32xbf16>
    %c0_1 = arith.constant 0 : index
    %c0_2 = arith.constant 0 : index
    %2 = vector.load %arg1[%c0_1, %c0_2] : memref<32x512xbf16, #tpu.memory_space<vmem>>, vector<32x512xbf16>
    %cst = arith.constant dense<0.000000e+00> : vector<16x512xf32>
    %3 = tpu.matmul %1, %2, %cst {dimension_numbers = #tpu.dot_dimension_numbers<[1], [0], [0], [1], [0, 0, 1, 1], [], []>} : vector<16x32xbf16>, vector<32x512xbf16>, vector<16x512xf32> -> vector<16x512xf32>
    %c0_3 = arith.constant 0 : index
    %c0_4 = arith.constant 0 : index
    %4 = vector.load %arg2[%c0_3, %c0_4] : memref<1x512xf32, #tpu.memory_space<vmem>>, vector<1x512xf32>
    %5 = vector.broadcast %4 : vector<1x512xf32> to vector<16x512xf32>
    %6 = arith.addf %3, %5 : vector<16x512xf32>
    %cst_5 = arith.constant 0.000000e+00 : f32
    %7 = vector.broadcast %cst_5 : f32 to vector<16x512xf32>
    %8 = arith.maximumf %6, %7 : vector<16x512xf32>
    %9 = arith.truncf %8 : vector<16x512xf32> to vector<16x512xbf16>
    %c0_6 = arith.constant 0 : index
    %c0_7 = arith.constant 0 : index
    %10 = vector.load %arg3[%c0_6, %c0_7] : memref<512x256xbf16, #tpu.memory_space<vmem>>, vector<512x256xbf16>
    %cst_8 = arith.constant dense<0.000000e+00> : vector<16x256xf32>
    %11 = tpu.matmul %9, %10, %cst_8 {dimension_numbers = #tpu.dot_dimension_numbers<[1], [0], [0], [1], [0, 0, 1, 1], [], []>} : vector<16x512xbf16>, vector<512x256xbf16>, vector<16x256xf32> -> vector<16x256xf32>
    %c0_9 = arith.constant 0 : index
    %c0_10 = arith.constant 0 : index
    %12 = vector.load %arg4[%c0_9, %c0_10] : memref<1x256xf32, #tpu.memory_space<vmem>>, vector<1x256xf32>
    %13 = vector.broadcast %12 : vector<1x256xf32> to vector<16x256xf32>
    %14 = arith.addf %11, %13 : vector<16x256xf32>
    %cst_11 = arith.constant 0.000000e+00 : f32
    %15 = vector.broadcast %cst_11 : f32 to vector<16x256xf32>
    %16 = arith.maximumf %14, %15 : vector<16x256xf32>
    %c0_12 = arith.constant 0 : index
    %c0_13 = arith.constant 0 : index
    %17 = vector.load %arg5[%c0_12, %c0_13] : memref<256x32xf32, #tpu.memory_space<vmem>>, vector<256x32xf32>
    %cst_14 = arith.constant dense<0.000000e+00> : vector<16x32xf32>
    %18 = tpu.matmul %16, %17, %cst_14 {dimension_numbers = #tpu.dot_dimension_numbers<[1], [0], [0], [1], [0, 0, 1, 1], [], []>} : vector<16x256xf32>, vector<256x32xf32>, vector<16x32xf32> -> vector<16x32xf32>
    %c0_15 = arith.constant 0 : index
    %c0_16 = arith.constant 0 : index
    %19 = vector.load %arg6[%c0_15, %c0_16] : memref<1x32xf32, #tpu.memory_space<vmem>>, vector<1x32xf32>
    %20 = vector.broadcast %19 : vector<1x32xf32> to vector<16x32xf32>
    %21 = arith.addf %18, %20 : vector<16x32xf32>
    %cst_17 = arith.constant 0.000000e+00 : f32
    %22 = vector.broadcast %cst_17 : f32 to vector<16x32xf32>
    %23 = arith.maximumf %21, %22 : vector<16x32xf32>
    %c0_18 = arith.constant 0 : index
    %c0_19 = arith.constant 0 : index
    %24 = vector.load %arg7[%c0_18, %c0_19] : memref<32x128xf32, #tpu.memory_space<vmem>>, vector<32x128xf32>
    %cst_20 = arith.constant dense<0.000000e+00> : vector<16x128xf32>
    %25 = tpu.matmul %23, %24, %cst_20 {dimension_numbers = #tpu.dot_dimension_numbers<[1], [0], [0], [1], [0, 0, 1, 1], [], []>} : vector<16x32xf32>, vector<32x128xf32>, vector<16x128xf32> -> vector<16x128xf32>
    %c0_21 = arith.constant 0 : index
    %c0_22 = arith.constant 0 : index
    %26 = vector.load %arg8[%c0_21, %c0_22] : memref<1x128xf32, #tpu.memory_space<vmem>>, vector<1x128xf32>
    %27 = vector.broadcast %26 : vector<1x128xf32> to vector<16x128xf32>
    %28 = arith.addf %25, %27 : vector<16x128xf32>
    %29 = tpu.iota {dimensions = array<i32: 1>} : vector<16x128xi32>
    %c3_i32 = arith.constant 3 : i32
    %30 = vector.broadcast %c3_i32 : i32 to vector<16x128xi32>
    %31 = arith.cmpi slt, %29, %30 : vector<16x128xi32>
    %cst_23 = arith.constant -1.000000e+30 : f32
    %32 = vector.broadcast %cst_23 : f32 to vector<16x128xf32>
    %33 = arith.select %31, %28, %32 : vector<16x128xi1>, vector<16x128xf32>
    %cst_24 = arith.constant dense<0xFF800000> : vector<16xf32>
    %34 = vector.multi_reduction <maximumf>, %33, %cst_24 [1] : vector<16x128xf32> to vector<16xf32>
    %35 = vector.shape_cast %34 : vector<16xf32> to vector<16x1xf32>
    %36 = vector.broadcast %35 : vector<16x1xf32> to vector<16x128xf32>
    %37 = arith.subf %33, %36 : vector<16x128xf32>
    %38 = math.exp %37 : vector<16x128xf32>
    %cst_25 = arith.constant dense<0.000000e+00> : vector<16xf32>
    %39 = vector.multi_reduction <add>, %38, %cst_25 [1] : vector<16x128xf32> to vector<16xf32>
    %40 = vector.shape_cast %39 : vector<16xf32> to vector<16x1xf32>
    %41 = math.log %40 : vector<16x1xf32>
    %42 = vector.broadcast %41 : vector<16x1xf32> to vector<16x128xf32>
    %43 = arith.subf %37, %42 : vector<16x128xf32>
    %c0_26 = arith.constant 0 : index
    %c0_27 = arith.constant 0 : index
    %44 = vector.load %arg9[%c0_26, %c0_27] : memref<16x128xf32, #tpu.memory_space<vmem>>, vector<16x128xf32>
    tpu.vector_store %arg9[%c0_26, %c0_27], %43 {strides = array<i32>} : memref<16x128xf32, #tpu.memory_space<vmem>>, vector<16x128xf32>,
    return
  }
}

</mosaic_0001>

<llo_original>
// kernel: tpu_custom_call.1
$region0: #{tpu_custom_call.1}
  #allocation0 [shape = 'u32[]', space=smem, size = 0x4, offset = 0x4, fixed_abs, tag = 'smem constant byte address 0x4 - core index']
  #allocation1 [shape = 'u32[144,128]{1,0:T(1,128)}', space=vmem, size = 0x12000, scoped, tag = 'internal scratch']
  %s0 = inlined_call_operand.vmem [shape: f32[16,32], index: 0, kind: input, shape index: {}]
  %s1 = inlined_call_operand.vmem [shape: bf16[32,512], index: 1, kind: input, shape index: {}]
  %s2 = inlined_call_operand.vmem [shape: f32[1,512], index: 2, kind: input, shape index: {}]
  %s3 = inlined_call_operand.hbm [shape: bf16[512,256], index: 3, kind: input, shape index: {}]
  %s4 = inlined_call_operand.vmem [shape: f32[1,256], index: 4, kind: input, shape index: {}]
  %s5 = inlined_call_operand.vmem [shape: f32[256,32], index: 5, kind: input, shape index: {}]
  %s6 = inlined_call_operand.vmem [shape: f32[1,32], index: 6, kind: input, shape index: {}]
  %s7 = inlined_call_operand.vmem [shape: f32[32,128], index: 7, kind: input, shape index: {}]
  %s8 = inlined_call_operand.vmem [shape: f32[1,128], index: 8, kind: input, shape index: {}]
  %s9 = inlined_call_operand.hbm [shape: f32[16,128], index: 9, kind: output, shape index: {}]
  %s10 = sld [smem:[#allocation0]]
  $region50: #{tpu_custom_call.1} parent=0
    _
  %s12 = ssub.s32 1, %s10
  %s13 = scalar_select 0, %s12, %s10
  $region1: #{tpu_custom_call.1} parent=0
    #allocation2 [shape = 'u8[262144]{0}', space=vmem, size = 0x40000, scoped, tag = 'input window, operand 3, single buffered']
    #allocation3 [shape = 's32[1]{0}', space=sflag, size = 0x4, scoped, tag = 'scoped memory for tpu_custom_call.1']
    #allocation4 [shape = 's32[1]{0}', space=sflag, size = 0x4, scoped, tag = 'scoped memory for tpu_custom_call.1']
    #allocation5 [shape = 'u8[8192]{0}', space=vmem, size = 0x2000, scoped, tag = 'output window, operand 0, single buffered']
    %14 = vsyncpa [#allocation3], 0
    %15 = vsyncpa [#allocation4], 0
    // Predicated region
    $region2: #{tpu_custom_call.1} parent=1 // pred_check
      _
    $region3: #{tpu_custom_call.1} parent=1 // pred_check_branch
      %17 = sbr.rel (0) target = $region5
    $region4: #{tpu_custom_call.1} parent=1 // pred_region
      _
    $region5: #{tpu_custom_call.1} parent=1 // pred_fallthru
      _
    // Predicated region
    $region6: #{tpu_custom_call.1} parent=1 // pred_check
      _
    $region7: #{tpu_custom_call.1} parent=1 // pred_check_branch
      %19 = sbr.rel (0) target = $region9
    $region8: #{tpu_custom_call.1} parent=1 // pred_region
      _
    $region9: #{tpu_custom_call.1} parent=1 // pred_fallthru
      _
    // Predicated region
    $region10: #{tpu_custom_call.1} parent=1 // pred_check
      _
    $region11: #{tpu_custom_call.1} parent=1 // pred_check_branch
      %21 = sbr.rel (0) target = $region13
    $region12: #{tpu_custom_call.1} parent=1 // pred_region
      _
    $region13: #{tpu_custom_call.1} parent=1 // pred_fallthru
      _
    // Predicated region
    $region14: #{tpu_custom_call.1} parent=1 // pred_check
      _
    $region15: #{tpu_custom_call.1} parent=1 // pred_check_branch
      %23 = sbr.rel (0) target = $region17
    $region16: #{tpu_custom_call.1} parent=1 // pred_region
      %s25 = ssub.s32 8192, 8192
      %26 = vsyncadd [#allocation3], %s25
      %s27 = sshll.u32 [#allocation2], 4
      %s28 = int_to_ptr.vmem [resolvable:$true] %s27
      %33 = dma.hbm_to_vmem [thread:$0]  %s3, 8192, %s28, [#allocation3], 128, 128, 8
    $region17: #{tpu_custom_call.1} parent=1 // pred_fallthru
      _
    // Predicated region
    $region18: #{tpu_custom_call.1} parent=1 // pred_check
      _
    $region19: #{tpu_custom_call.1} parent=1 // pred_check_branch
      %35 = sbr.rel (0) target = $region21
    $region20: #{tpu_custom_call.1} parent=1 // pred_region
      _
    $region21: #{tpu_custom_call.1} parent=1 // pred_fallthru
      _
    // Predicated region
    $region22: #{tpu_custom_call.1} parent=1 // pred_check
      _
    $region23: #{tpu_custom_call.1} parent=1 // pred_check_branch
      %37 = sbr.rel (0) target = $region25
    $region24: #{tpu_custom_call.1} parent=1 // pred_region
      _
    $region25: #{tpu_custom_call.1} parent=1 // pred_fallthru
      _
    // Predicated region
    $region26: #{tpu_custom_call.1} parent=1 // pred_check
      _
    $region27: #{tpu_custom_call.1} parent=1 // pred_check_branch
      %39 = sbr.rel (0) target = $region29
    $region28: #{tpu_custom_call.1} parent=1 // pred_region
      _
    $region29: #{tpu_custom_call.1} parent=1 // pred_fallthru
      _
    // Predicated region
    $region30: #{tpu_custom_call.1} parent=1 // pred_check
      _
    $region31: #{tpu_custom_call.1} parent=1 // pred_check_branch
      %41 = sbr.rel (0) target = $region33
    $region32: #{tpu_custom_call.1} parent=1 // pred_region
      _
    $region33: #{tpu_custom_call.1} parent=1 // pred_fallthru
      _
    // Predicated region
    $region34: #{tpu_custom_call.1} parent=1 // pred_check
      _
    $region35: #{tpu_custom_call.1} parent=1 // pred_check_branch
      %43 = sbr.rel (0) target = $region37
    $region36: #{tpu_custom_call.1} parent=1 // pred_region
      _
    $region37: #{tpu_custom_call.1} parent=1 // pred_fallthru
      _
    // Predicated region
    $region38: #{tpu_custom_call.1} parent=1 // pred_check
      _
    $region39: #{tpu_custom_call.1} parent=1 // pred_check_branch
      %45 = sbr.rel (0) target = $region41
    $region40: #{tpu_custom_call.1} parent=1 // pred_region
      %46 = dma.done [#allocation3], 8192
    $region41: #{tpu_custom_call.1} parent=1 // pred_fallthru
      _
    %v48 = vld [vmem:[%s0] sm:$0xff]
    %v49 = vld [vmem:[%s0 + $0x8] sm:$0xff]
    %v50 = vpack.c.bf16 %v49, %v48
    %v51 = vld [vmem:[%s1] sm:$0xff]
    %v52 = vld [vmem:[%s1 + $0x8] sm:$0xff]
    %v53 = vld [vmem:[%s1 + $0x10] sm:$0xff]
    %v54 = vld [vmem:[%s1 + $0x18] sm:$0xff]
    %v55 = vld [vmem:[%s1 + $0x20] sm:$0xff]
    %v56 = vld [vmem:[%s1 + $0x28] sm:$0xff]
    %v57 = vld [vmem:[%s1 + $0x30] sm:$0xff]
    %v58 = vld [vmem:[%s1 + $0x38] sm:$0xff]
    %v59 = vld [vmem:[%s2] sm:$0xf]
    %v61 = vlaneseq
    %v62 = vshrl.u32 %v61, 7
    %v63 = vsub.s32 0, %v62
    %v64 = vrot.slane %v59, %v63
    %v65 = vlaneseq
    %v66 = vshrl.u32 %v65, 7
    %v67 = vsub.s32 1, %v66
    %v68 = vrot.slane %v59, %v67
    %v69 = vlaneseq
    %v70 = vshrl.u32 %v69, 7
    %v71 = vsub.s32 2, %v70
    %v72 = vrot.slane %v59, %v71
    %v73 = vlaneseq
    %v74 = vshrl.u32 %v73, 7
    %v75 = vsub.s32 3, %v74
    %v76 = vrot.slane %v59, %v75
    %v89 = vunpack.c.l.b16 %v51
    %v90 = vunpack.c.h.b16 %v51
    %v91 = vunpack.c.l.b16 %v52
    %v92 = vunpack.c.h.b16 %v52
    %v93 = vunpack.c.l.b16 %v53
    %v94 = vunpack.c.h.b16 %v53
    %v95 = vunpack.c.l.b16 %v54
    %v96 = vunpack.c.h.b16 %v54
    %v97 = vunpack.c.l.b16 %v55
    %v98 = vunpack.c.h.b16 %v55
    %v99 = vunpack.c.l.b16 %v56
    %v100 = vunpack.c.h.b16 %v56
    %v101 = vunpack.c.l.b16 %v57
    %v102 = vunpack.c.h.b16 %v57
    %v103 = vunpack.c.l.b16 %v58
    %v104 = vunpack.c.h.b16 %v58
    %v105 = vpack.c.b16 %v93, %v89
    %v106 = vpack.c.b16 %v94, %v90
    %v107 = vpack.c.b16 %v95, %v91
    %v108 = vpack.c.b16 %v96, %v92
    %v109 = vpack.c.b16 %v101, %v97
    %v110 = vpack.c.b16 %v102, %v98
    %v111 = vpack.c.b16 %v103, %v99
    %v112 = vpack.c.b16 %v104, %v100
    %vm121 = vcmask 261120
    %v123 = vsel %vm121, %v50, 0
    %125 = vmatprep.subr.bf16.mxu0 %v106
    %126 = vmatpush1.bf16.msra.mxu0 %v105
    %127 = vmatprep.subr.bf16.mxu0 %v110
    %128 = vmatpush1.bf16.msra.mxu0 %v109
    %129 = vmatprep.subr.bf16.mxu0 0
    %130 = vmatpush1.bf16.msra.mxu0 0
    %131 = vmatprep.subr.bf16.mxu0 0
    %132 = vmatpush1.bf16.msra.mxu0 0
    %133 = vmatprep.subr.bf16.mxu0 0
    %134 = vmatpush1.bf16.msra.mxu0 0
    %135 = vmatprep.subr.bf16.mxu0 0
    %136 = vmatpush1.bf16.msra.mxu0 0
    %137 = vmatprep.subr.bf16.mxu0 0
    %138 = vmatpush1.bf16.msra.mxu0 0
    %139 = vmatprep.subr.bf16.mxu0 0
    %140 = vmatpush1.bf16.msra.mxu0 0
    %141 = vmatprep.subr.bf16.mxu0 0
    %142 = vmatpush1.bf16.msra.mxu0 0
    %143 = vmatprep.subr.bf16.mxu0 0
    %144 = vmatpush1.bf16.msra.mxu0 0
    %145 = vmatprep.subr.bf16.mxu0 0
    %146 = vmatpush1.bf16.msra.mxu0 0
    %147 = vmatprep.subr.bf16.mxu0 0
    %148 = vmatpush1.bf16.msra.mxu0 0
    %149 = vmatprep.subr.bf16.mxu0 0
    %150 = vmatpush1.bf16.msra.mxu0 0
    %151 = vmatprep.subr.bf16.mxu0 0
    %152 = vmatpush1.bf16.msra.mxu0 0
    %153 = vmatprep.subr.bf16.mxu0 0
    %154 = vmatpush1.bf16.msra.mxu0 0
    %155 = vmatprep.subr.bf16.mxu0 0
    %156 = vmatpush1.bf16.msra.mxu0 0
    %157 = vmatprep.mubr.bf16.mxu0 0
    %158 = vmatmul.mubr.bf16.gmra.mrb[0].mxu0 %v123
    %v159 = vpop.f32.mrb[0].mxu0
    %v160 = vadd.f32 %v64, %v159
    %v161 = vpop.f32.mrb[0].mxu0
    %v162 = vadd.f32 %v68, %v161
    %v163 = vpop.f32.mrb[0].mxu0
    %v164 = vadd.f32 %v64, %v163
    %v165 = vpop.f32.mrb[0].mxu0
    %v166 = vadd.f32 %v68, %v165
    %167 = vdwg.mxu0
    %168 = vmatprep.subr.bf16.mxu0 %v108
    %169 = vmatpush1.bf16.msra.mxu0 %v107
    %170 = vmatprep.subr.bf16.mxu0 %v112
    %171 = vmatpush1.bf16.msra.mxu0 %v111
    %172 = vmatprep.subr.bf16.mxu0 0
    %173 = vmatpush1.bf16.msra.mxu0 0
    %174 = vmatprep.subr.bf16.mxu0 0
    %175 = vmatpush1.bf16.msra.mxu0 0
    %176 = vmatprep.subr.bf16.mxu0 0
    %177 = vmatpush1.bf16.msra.mxu0 0
    %178 = vmatprep.subr.bf16.mxu0 0
    %179 = vmatpush1.bf16.msra.mxu0 0
    %180 = vmatprep.subr.bf16.mxu0 0
    %181 = vmatpush1.bf16.msra.mxu0 0
    %182 = vmatprep.subr.bf16.mxu0 0
    %183 = vmatpush1.bf16.msra.mxu0 0
    %184 = vmatprep.subr.bf16.mxu0 0
    %185 = vmatpush1.bf16.msra.mxu0 0
    %186 = vmatprep.subr.bf16.mxu0 0
    %187 = vmatpush1.bf16.msra.mxu0 0
    %188 = vmatprep.subr.bf16.mxu0 0
    %189 = vmatpush1.bf16.msra.mxu0 0
    %190 = vmatprep.subr.bf16.mxu0 0
    %191 = vmatpush1.bf16.msra.mxu0 0
    %192 = vmatprep.subr.bf16.mxu0 0
    %193 = vmatpush1.bf16.msra.mxu0 0
    %194 = vmatprep.subr.bf16.mxu0 0
    %195 = vmatpush1.bf16.msra.mxu0 0
    %196 = vmatprep.subr.bf16.mxu0 0
    %197 = vmatpush1.bf16.msra.mxu0 0
    %198 = vmatprep.subr.bf16.mxu0 0
    %199 = vmatpush1.bf16.msra.mxu0 0
    %200 = vmatprep.mubr.bf16.mxu0 0
    %201 = vmatmul.mubr.bf16.gmra.mrb[0].mxu0 %v123
    %v202 = vpop.f32.mrb[0].mxu0
    %v203 = vadd.f32 %v72, %v202
    %v204 = vpop.f32.mrb[0].mxu0
    %v205 = vadd.f32 %v76, %v204
    %v206 = vpop.f32.mrb[0].mxu0
    %v207 = vadd.f32 %v72, %v206
    %v208 = vpop.f32.mrb[0].mxu0
    %v209 = vadd.f32 %v76, %v208
    %210 = vdwg.mxu0
    %v211 = vmax.f32 %v160, 0.0
    %v212 = vmax.f32 %v162, 0.0
    %v213 = vmax.f32 %v203, 0.0
    %v214 = vmax.f32 %v205, 0.0
    %v215 = vmax.f32 %v164, 0.0
    %v216 = vmax.f32 %v166, 0.0
    %v217 = vmax.f32 %v207, 0.0
    %v218 = vmax.f32 %v209, 0.0
    %v219 = vpack.c.bf16 %v215, %v211
    %v220 = vpack.c.bf16 %v216, %v212
    %v221 = vpack.c.bf16 %v217, %v213
    %v222 = vpack.c.bf16 %v218, %v214
    %v223 = vld [vmem:[#allocation2] sm:$0xff]
    %v224 = vld [vmem:[#allocation2 + $0x8] sm:$0xff]
    %v225 = vld [vmem:[#allocation2 + $0x10] sm:$0xff]
    %v226 = vld [vmem:[#allocation2 + $0x18] sm:$0xff]
    %v227 = vld [vmem:[#allocation2 + $0x20] sm:$0xff]
    %v228 = vld [vmem:[#allocation2 + $0x28] sm:$0xff]
    %v229 = vld [vmem:[#allocation2 + $0x30] sm:$0xff]
    %v230 = vld [vmem:[#allocation2 + $0x38] sm:$0xff]
    %v231 = vld [vmem:[#allocation2 + $0x40] sm:$0xff]
    %v232 = vld [vmem:[#allocation2 + $0x48] sm:$0xff]
    %v233 = vld [vmem:[#allocation2 + $0x50] sm:$0xff]
    %v234 = vld [vmem:[#allocation2 + $0x58] sm:$0xff]
    %v235 = vld [vmem:[#allocation2 + $0x60] sm:$0xff]
    %v236 = vld [vmem:[#allocation2 + $0x68] sm:$0xff]
    %v237 = vld [vmem:[#allocation2 + $0x70] sm:$0xff]
    %v238 = vld [vmem:[#allocation2 + $0x78] sm:$0xff]
    %v239 = vld [vmem:[#allocation2 + $0x80] sm:$0xff]
    %v240 = vld [vmem:[#allocation2 + $0x88] sm:$0xff]
    %v241 = vld [vmem:[#allocation2 + $0x90] sm:$0xff]
    %v242 = vld [vmem:[#allocation2 + $0x98] sm:$0xff]
    %v243 = vld [vmem:[#allocation2 + $0xa0] sm:$0xff]
    %v244 = vld [vmem:[#allocation2 + $0xa8] sm:$0xff]
    %v245 = vld [vmem:[#allocation2 + $0xb0] sm:$0xff]
    %v246 = vld [vmem:[#allocation2 + $0xb8] sm:$0xff]
    %v247 = vld [vmem:[#allocation2 + $0xc0] sm:$0xff]
    %v248 = vld [vmem:[#allocation2 + $0xc8] sm:$0xff]
    %v249 = vld [vmem:[#allocation2 + $0xd0] sm:$0xff]
    %v250 = vld [vmem:[#allocation2 + $0xd8] sm:$0xff]
    %v251 = vld [vmem:[#allocation2 + $0xe0] sm:$0xff]
    %v252 = vld [vmem:[#allocation2 + $0xe8] sm:$0xff]
    %v253 = vld [vmem:[#allocation2 + $0xf0] sm:$0xff]
    %v254 = vld [vmem:[#allocation2 + $0xf8] sm:$0xff]
    %v255 = vld [vmem:[#allocation2 + $0x100] sm:$0xff]
    %v256 = vld [vmem:[#allocation2 + $0x108] sm:$0xff]
    %v257 = vld [vmem:[#allocation2 + $0x110] sm:$0xff]
    %v258 = vld [vmem:[#allocation2 + $0x118] sm:$0xff]
    %v259 = vld [vmem:[#allocation2 + $0x120] sm:$0xff]
    %v260 = vld [vmem:[#allocation2 + $0x128] sm:$0xff]
    %v261 = vld [vmem:[#allocation2 + $0x130] sm:$0xff]
    %v262 = vld [vmem:[#allocation2 + $0x138] sm:$0xff]
    %v263 = vld [vmem:[#allocation2 + $0x140] sm:$0xff]
    %v264 = vld [vmem:[#allocation2 + $0x148] sm:$0xff]
    %v265 = vld [vmem:[#allocation2 + $0x150] sm:$0xff]
    %v266 = vld [vmem:[#allocation2 + $0x158] sm:$0xff]
    %v267 = vld [vmem:[#allocation2 + $0x160] sm:$0xff]
    %v268 = vld [vmem:[#allocation2 + $0x168] sm:$0xff]
    %v269 = vld [vmem:[#allocation2 + $0x170] sm:$0xff]
    %v270 = vld [vmem:[#allocation2 + $0x178] sm:$0xff]
    %v271 = vld [vmem:[#allocation2 + $0x180] sm:$0xff]
    %v272 = vld [vmem:[#allocation2 + $0x188] sm:$0xff]
    %v273 = vld [vmem:[#allocation2 + $0x190] sm:$0xff]
    %v274 = vld [vmem:[#allocation2 + $0x198] sm:$0xff]
    %v275 = vld [vmem:[#allocation2 + $0x1a0] sm:$0xff]
    %v276 = vld [vmem:[#allocation2 + $0x1a8] sm:$0xff]
    %v277 = vld [vmem:[#allocation2 + $0x1b0] sm:$0xff]
    %v278 = vld [vmem:[#allocation2 + $0x1b8] sm:$0xff]
    %v279 = vld [vmem:[#allocation2 + $0x1c0] sm:$0xff]
    %v280 = vld [vmem:[#allocation2 + $0x1c8] sm:$0xff]
    %v281 = vld [vmem:[#allocation2 + $0x1d0] sm:$0xff]
    %v282 = vld [vmem:[#allocation2 + $0x1d8] sm:$0xff]
    %v283 = vld [vmem:[#allocation2 + $0x1e0] sm:$0xff]
    %v284 = vld [vmem:[#allocation2 + $0x1e8] sm:$0xff]
    %v285 = vld [vmem:[#allocation2 + $0x1f0] sm:$0xff]
    %v286 = vld [vmem:[#allocation2 + $0x1f8] sm:$0xff]
    %v287 = vld [vmem:[%s4] sm:$0x3]
    %v289 = vlaneseq
    %v290 = vshrl.u32 %v289, 7
    %v291 = vsub.s32 0, %v290
    %v292 = vrot.slane %v287, %v291
    %v293 = vlaneseq
    %v294 = vshrl.u32 %v293, 7
    %v295 = vsub.s32 1, %v294
    %v296 = vrot.slane %v287, %v295
    %v363 = vunpack.c.l.b16 %v223
    %v364 = vunpack.c.h.b16 %v223
    %v365 = vunpack.c.l.b16 %v224
    %v366 = vunpack.c.h.b16 %v224
    %v367 = vunpack.c.l.b16 %v225
    %v368 = vunpack.c.h.b16 %v225
    %v369 = vunpack.c.l.b16 %v226
    %v370 = vunpack.c.h.b16 %v226
    %v371 = vunpack.c.l.b16 %v227
    %v372 = vunpack.c.h.b16 %v227
    %v373 = vunpack.c.l.b16 %v228
    %v374 = vunpack.c.h.b16 %v228
    %v375 = vunpack.c.l.b16 %v229
    %v376 = vunpack.c.h.b16 %v229
    %v377 = vunpack.c.l.b16 %v230
    %v378 = vunpack.c.h.b16 %v230
    %v379 = vunpack.c.l.b16 %v231
    %v380 = vunpack.c.h.b16 %v231
    %v381 = vunpack.c.l.b16 %v232
    %v382 = vunpack.c.h.b16 %v232
    %v383 = vunpack.c.l.b16 %v233
    %v384 = vunpack.c.h.b16 %v233
    %v385 = vunpack.c.l.b16 %v234
    %v386 = vunpack.c.h.b16 %v234
    %v387 = vunpack.c.l.b16 %v235
    %v388 = vunpack.c.h.b16 %v235
    %v389 = vunpack.c.l.b16 %v236
    %v390 = vunpack.c.h.b16 %v236
    %v391 = vunpack.c.l.b16 %v237
    %v392 = vunpack.c.h.b16 %v237
    %v393 = vunpack.c.l.b16 %v238
    %v394 = vunpack.c.h.b16 %v238
    %v395 = vunpack.c.l.b16 %v239
    %v396 = vunpack.c.h.b16 %v239
    %v397 = vunpack.c.l.b16 %v240
    %v398 = vunpack.c.h.b16 %v240
    %v399 = vunpack.c.l.b16 %v241
    %v400 = vunpack.c.h.b16 %v241
    %v401 = vunpack.c.l.b16 %v242
    %v402 = vunpack.c.h.b16 %v242
    %v403 = vunpack.c.l.b16 %v243
    %v404 = vunpack.c.h.b16 %v243
    %v405 = vunpack.c.l.b16 %v244
    %v406 = vunpack.c.h.b16 %v244
    %v407 = vunpack.c.l.b16 %v245
    %v408 = vunpack.c.h.b16 %v245
    %v409 = vunpack.c.l.b16 %v246
    %v410 = vunpack.c.h.b16 %v246
    %v411 = vunpack.c.l.b16 %v247
    %v412 = vunpack.c.h.b16 %v247
    %v413 = vunpack.c.l.b16 %v248
    %v414 = vunpack.c.h.b16 %v248
    %v415 = vunpack.c.l.b16 %v249
    %v416 = vunpack.c.h.b16 %v249
    %v417 = vunpack.c.l.b16 %v250
    %v418 = vunpack.c.h.b16 %v250
    %v419 = vunpack.c.l.b16 %v251
    %v420 = vunpack.c.h.b16 %v251
    %v421 = vunpack.c.l.b16 %v252
    %v422 = vunpack.c.h.b16 %v252
    %v423 = vunpack.c.l.b16 %v253
    %v424 = vunpack.c.h.b16 %v253
    %v425 = vunpack.c.l.b16 %v254
    %v426 = vunpack.c.h.b16 %v254
    %v427 = vunpack.c.l.b16 %v255
    %v428 = vunpack.c.h.b16 %v255
    %v429 = vunpack.c.l.b16 %v256
    %v430 = vunpack.c.h.b16 %v256
    %v431 = vunpack.c.l.b16 %v257
    %v432 = vunpack.c.h.b16 %v257
    %v433 = vunpack.c.l.b16 %v258
    %v434 = vunpack.c.h.b16 %v258
    %v435 = vunpack.c.l.b16 %v259
    %v436 = vunpack.c.h.b16 %v259
    %v437 = vunpack.c.l.b16 %v260
    %v438 = vunpack.c.h.b16 %v260
    %v439 = vunpack.c.l.b16 %v261
    %v440 = vunpack.c.h.b16 %v261
    %v441 = vunpack.c.l.b16 %v262
    %v442 = vunpack.c.h.b16 %v262
    %v443 = vunpack.c.l.b16 %v263
    %v444 = vunpack.c.h.b16 %v263
    %v445 = vunpack.c.l.b16 %v264
    %v446 = vunpack.c.h.b16 %v264
    %v447 = vunpack.c.l.b16 %v265
    %v448 = vunpack.c.h.b16 %v265
    %v449 = vunpack.c.l.b16 %v266
    %v450 = vunpack.c.h.b16 %v266
    %v451 = vunpack.c.l.b16 %v267
    %v452 = vunpack.c.h.b16 %v267
    %v453 = vunpack.c.l.b16 %v268
    %v454 = vunpack.c.h.b16 %v268
    %v455 = vunpack.c.l.b16 %v269
    %v456 = vunpack.c.h.b16 %v269
    %v457 = vunpack.c.l.b16 %v270
    %v458 = vunpack.c.h.b16 %v270
    %v459 = vunpack.c.l.b16 %v271
    %v460 = vunpack.c.h.b16 %v271
    %v461 = vunpack.c.l.b16 %v272
    %v462 = vunpack.c.h.b16 %v272
    %v463 = vunpack.c.l.b16 %v273
    %v464 = vunpack.c.h.b16 %v273
    %v465 = vunpack.c.l.b16 %v274
    %v466 = vunpack.c.h.b16 %v274
    %v467 = vunpack.c.l.b16 %v275
    %v468 = vunpack.c.h.b16 %v275
    %v469 = vunpack.c.l.b16 %v276
    %v470 = vunpack.c.h.b16 %v276
    %v471 = vunpack.c.l.b16 %v277
    %v472 = vunpack.c.h.b16 %v277
    %v473 = vunpack.c.l.b16 %v278
    %v474 = vunpack.c.h.b16 %v278
    %v475 = vunpack.c.l.b16 %v279
    %v476 = vunpack.c.h.b16 %v279
    %v477 = vunpack.c.l.b16 %v280
    %v478 = vunpack.c.h.b16 %v280
    %v479 = vunpack.c.l.b16 %v281
    %v480 = vunpack.c.h.b16 %v281
    %v481 = vunpack.c.l.b16 %v282
    %v482 = vunpack.c.h.b16 %v282
    %v483 = vunpack.c.l.b16 %v283
    %v484 = vunpack.c.h.b16 %v283
    %v485 = vunpack.c.l.b16 %v284
    %v486 = vunpack.c.h.b16 %v284
    %v487 = vunpack.c.l.b16 %v285
    %v488 = vunpack.c.h.b16 %v285
    %v489 = vunpack.c.l.b16 %v286
    %v490 = vunpack.c.h.b16 %v286
    %v491 = vpack.c.b16 %v365, %v363
    %v492 = vpack.c.b16 %v366, %v364
    %v493 = vpack.c.b16 %v369, %v367
    %v494 = vpack.c.b16 %v370, %v368
    %v495 = vpack.c.b16 %v373, %v371
    %v496 = vpack.c.b16 %v374, %v372
    %v497 = vpack.c.b16 %v377, %v375
    %v498 = vpack.c.b16 %v378, %v376
    %v499 = vpack.c.b16 %v381, %v379
    %v500 = vpack.c.b16 %v382, %v380
    %v501 = vpack.c.b16 %v385, %v383
    %v502 = vpack.c.b16 %v386, %v384
    %v503 = vpack.c.b16 %v389, %v387
    %v504 = vpack.c.b16 %v390, %v388
    %v505 = vpack.c.b16 %v393, %v391
    %v506 = vpack.c.b16 %v394, %v392
    %v507 = vpack.c.b16 %v397, %v395
    %v508 = vpack.c.b16 %v398, %v396
    %v509 = vpack.c.b16 %v401, %v399
    %v510 = vpack.c.b16 %v402, %v400
    %v511 = vpack.c.b16 %v405, %v403
    %v512 = vpack.c.b16 %v406, %v404
    %v513 = vpack.c.b16 %v409, %v407
    %v514 = vpack.c.b16 %v410, %v408
    %v515 = vpack.c.b16 %v413, %v411
    %v516 = vpack.c.b16 %v414, %v412
    %v517 = vpack.c.b16 %v417, %v415
    %v518 = vpack.c.b16 %v418, %v416
    %v519 = vpack.c.b16 %v421, %v419
    %v520 = vpack.c.b16 %v422, %v420
    %v521 = vpack.c.b16 %v425, %v423
    %v522 = vpack.c.b16 %v426, %v424
    %v523 = vpack.c.b16 %v429, %v427
    %v524 = vpack.c.b16 %v430, %v428
    %v525 = vpack.c.b16 %v433, %v431
    %v526 = vpack.c.b16 %v434, %v432
    %v527 = vpack.c.b16 %v437, %v435
    %v528 = vpack.c.b16 %v438, %v436
    %v529 = vpack.c.b16 %v441, %v439
    %v530 = vpack.c.b16 %v442, %v440
    %v531 = vpack.c.b16 %v445, %v443
    %v532 = vpack.c.b16 %v446, %v444
    %v533 = vpack.c.b16 %v449, %v447
    %v534 = vpack.c.b16 %v450, %v448
    %v535 = vpack.c.b16 %v453, %v451
    %v536 = vpack.c.b16 %v454, %v452
    %v537 = vpack.c.b16 %v457, %v455
    %v538 = vpack.c.b16 %v458, %v456
    %v539 = vpack.c.b16 %v461, %v459
    %v540 = vpack.c.b16 %v462, %v460
    %v541 = vpack.c.b16 %v465, %v463
    %v542 = vpack.c.b16 %v466, %v464
    %v543 = vpack.c.b16 %v469, %v467
    %v544 = vpack.c.b16 %v470, %v468
    %v545 = vpack.c.b16 %v473, %v471
    %v546 = vpack.c.b16 %v474, %v472
    %v547 = vpack.c.b16 %v477, %v475
    %v548 = vpack.c.b16 %v478, %v476
    %v549 = vpack.c.b16 %v481, %v479
    %v550 = vpack.c.b16 %v482, %v480
    %v551 = vpack.c.b16 %v485, %v483
    %v552 = vpack.c.b16 %v486, %v484
    %v553 = vpack.c.b16 %v489, %v487
    %v554 = vpack.c.b16 %v490, %v488
    %619 = vmatprep.subr.bf16.mxu0 %v492
    %620 = vmatpush1.bf16.msra.mxu0 %v491
    %621 = vmatprep.subr.bf16.mxu0 %v494
    %622 = vmatpush1.bf16.msra.mxu0 %v493
    %623 = vmatprep.subr.bf16.mxu0 %v496
    %624 = vmatpush1.bf16.msra.mxu0 %v495
    %625 = vmatprep.subr.bf16.mxu0 %v498
    %626 = vmatpush1.bf16.msra.mxu0 %v497
    %627 = vmatprep.subr.bf16.mxu0 %v500
    %628 = vmatpush1.bf16.msra.mxu0 %v499
    %629 = vmatprep.subr.bf16.mxu0 %v502
    %630 = vmatpush1.bf16.msra.mxu0 %v501
    %631 = vmatprep.subr.bf16.mxu0 %v504
    %632 = vmatpush1.bf16.msra.mxu0 %v503
    %633 = vmatprep.subr.bf16.mxu0 %v506
    %634 = vmatpush1.bf16.msra.mxu0 %v505
    %635 = vmatprep.subr.bf16.mxu0 %v508
    %636 = vmatpush1.bf16.msra.mxu0 %v507
    %637 = vmatprep.subr.bf16.mxu0 %v510
    %638 = vmatpush1.bf16.msra.mxu0 %v509
    %639 = vmatprep.subr.bf16.mxu0 %v512
    %640 = vmatpush1.bf16.msra.mxu0 %v511
    %641 = vmatprep.subr.bf16.mxu0 %v514
    %642 = vmatpush1.bf16.msra.mxu0 %v513
    %643 = vmatprep.subr.bf16.mxu0 %v516
    %644 = vmatpush1.bf16.msra.mxu0 %v515
    %645 = vmatprep.subr.bf16.mxu0 %v518
    %646 = vmatpush1.bf16.msra.mxu0 %v517
    %647 = vmatprep.subr.bf16.mxu0 %v520
    %648 = vmatpush1.bf16.msra.mxu0 %v519
    %649 = vmatprep.subr.bf16.mxu0 %v522
    %650 = vmatpush1.bf16.msra.mxu0 %v521
    %651 = vmatprep.mubr.bf16.mxu0 %v220
    %652 = vmatmul.mubr.bf16.gmra.mrb[0].mxu0 %v219
    %v653 = vpop.f32.mrb[0].mxu0
    %v654 = vadd.f32 %v292, %v653
    %v655 = vpop.f32.mrb[0].mxu0
    %v656 = vadd.f32 %v296, %v655
    %v657 = vpop.f32.mrb[0].mxu0
    %v658 = vadd.f32 %v292, %v657
    %v659 = vpop.f32.mrb[0].mxu0
    %v660 = vadd.f32 %v296, %v659
    %661 = vdwg.mxu0
    %662 = vmatprep.subr.bf16.mxu0 %v524
    %663 = vmatpush1.bf16.msra.mxu0 %v523
    %664 = vmatprep.subr.bf16.mxu0 %v526
    %665 = vmatpush1.bf16.msra.mxu0 %v525
    %666 = vmatprep.subr.bf16.mxu0 %v528
    %667 = vmatpush1.bf16.msra.mxu0 %v527
    %668 = vmatprep.subr.bf16.mxu0 %v530
    %669 = vmatpush1.bf16.msra.mxu0 %v529
    %670 = vmatprep.subr.bf16.mxu0 %v532
    %671 = vmatpush1.bf16.msra.mxu0 %v531
    %672 = vmatprep.subr.bf16.mxu0 %v534
    %673 = vmatpush1.bf16.msra.mxu0 %v533
    %674 = vmatprep.subr.bf16.mxu0 %v536
    %675 = vmatpush1.bf16.msra.mxu0 %v535
    %676 = vmatprep.subr.bf16.mxu0 %v538
    %677 = vmatpush1.bf16.msra.mxu0 %v537
    %678 = vmatprep.subr.bf16.mxu0 %v540
    %679 = vmatpush1.bf16.msra.mxu0 %v539
    %680 = vmatprep.subr.bf16.mxu0 %v542
    %681 = vmatpush1.bf16.msra.mxu0 %v541
    %682 = vmatprep.subr.bf16.mxu0 %v544
    %683 = vmatpush1.bf16.msra.mxu0 %v543
    %684 = vmatprep.subr.bf16.mxu0 %v546
    %685 = vmatpush1.bf16.msra.mxu0 %v545
    %686 = vmatprep.subr.bf16.mxu0 %v548
    %687 = vmatpush1.bf16.msra.mxu0 %v547
    %688 = vmatprep.subr.bf16.mxu0 %v550
    %689 = vmatpush1.bf16.msra.mxu0 %v549
    %690 = vmatprep.subr.bf16.mxu0 %v552
    %691 = vmatpush1.bf16.msra.mxu0 %v551
    %692 = vmatprep.subr.bf16.mxu0 %v554
    %693 = vmatpush1.bf16.msra.mxu0 %v553
    %694 = vmatprep.mubr.bf16.mxu0 %v222
    %695 = vmatmul.mubr.bf16.gmra.mrb[0].mxu0 %v221
    %v696 = vpop.f32.mrb[0].mxu0
    %v697 = vadd.f32 %v654, %v696
    %v698 = vpop.f32.mrb[0].mxu0
    %v699 = vadd.f32 %v656, %v698
    %v700 = vpop.f32.mrb[0].mxu0
    %v701 = vadd.f32 %v658, %v700
    %v702 = vpop.f32.mrb[0].mxu0
    %v703 = vadd.f32 %v660, %v702
    %704 = vdwg.mxu0
    %v705 = vmax.f32 %v697, 0.0
    %v706 = vmax.f32 %v699, 0.0
    %v707 = vmax.f32 %v701, 0.0
    %v708 = vmax.f32 %v703, 0.0
    %v709 = vld [vmem:[%s5] sm:$0xff]
    %v710 = vld [vmem:[%s5 + $0x8] sm:$0xff]
    %v711 = vld [vmem:[%s5 + $0x10] sm:$0xff]
    %v712 = vld [vmem:[%s5 + $0x18] sm:$0xff]
    %v713 = vld [vmem:[%s5 + $0x20] sm:$0xff]
    %v714 = vld [vmem:[%s5 + $0x28] sm:$0xff]
    %v715 = vld [vmem:[%s5 + $0x30] sm:$0xff]
    %v716 = vld [vmem:[%s5 + $0x38] sm:$0xff]
    %v717 = vld [vmem:[%s5 + $0x40] sm:$0xff]
    %v718 = vld [vmem:[%s5 + $0x48] sm:$0xff]
    %v719 = vld [vmem:[%s5 + $0x50] sm:$0xff]
    %v720 = vld [vmem:[%s5 + $0x58] sm:$0xff]
    %v721 = vld [vmem:[%s5 + $0x60] sm:$0xff]
    %v722 = vld [vmem:[%s5 + $0x68] sm:$0xff]
    %v723 = vld [vmem:[%s5 + $0x70] sm:$0xff]
    %v724 = vld [vmem:[%s5 + $0x78] sm:$0xff]
    %v725 = vld [vmem:[%s5 + $0x80] sm:$0xff]
    %v726 = vld [vmem:[%s5 + $0x88] sm:$0xff]
    %v727 = vld [vmem:[%s5 + $0x90] sm:$0xff]
    %v728 = vld [vmem:[%s5 + $0x98] sm:$0xff]
    %v729 = vld [vmem:[%s5 + $0xa0] sm:$0xff]
    %v730 = vld [vmem:[%s5 + $0xa8] sm:$0xff]
    %v731 = vld [vmem:[%s5 + $0xb0] sm:$0xff]
    %v732 = vld [vmem:[%s5 + $0xb8] sm:$0xff]
    %v733 = vld [vmem:[%s5 + $0xc0] sm:$0xff]
    %v734 = vld [vmem:[%s5 + $0xc8] sm:$0xff]
    %v735 = vld [vmem:[%s5 + $0xd0] sm:$0xff]
    %v736 = vld [vmem:[%s5 + $0xd8] sm:$0xff]
    %v737 = vld [vmem:[%s5 + $0xe0] sm:$0xff]
    %v738 = vld [vmem:[%s5 + $0xe8] sm:$0xff]
    %v739 = vld [vmem:[%s5 + $0xf0] sm:$0xff]
    %v740 = vld [vmem:[%s5 + $0xf8] sm:$0xff]
    %v741 = vld [vmem:[%s6] sm:$0x1]
    %v743 = vlaneseq
    %v744 = vshrl.u32 %v743, 7
    %v745 = vsub.s32 0, %v744
    %v746 = vrot.slane %v741, %v745
    %748 = vmatprep.subr.mxu0 0.0
    %749 = vmatpush1.msra.mxu0 %v709
    %750 = vmatprep.subr.mxu0 0.0
    %751 = vmatpush1.msra.mxu0 %v710
    %752 = vmatprep.subr.mxu0 0.0
    %753 = vmatpush1.msra.mxu0 %v711
    %754 = vmatprep.subr.mxu0 0.0
    %755 = vmatpush1.msra.mxu0 %v712
    %756 = vmatprep.subr.mxu0 0.0
    %757 = vmatpush1.msra.mxu0 %v713
    %758 = vmatprep.subr.mxu0 0.0
    %759 = vmatpush1.msra.mxu0 %v714
    %760 = vmatprep.subr.mxu0 0.0
    %761 = vmatpush1.msra.mxu0 %v715
    %762 = vmatprep.subr.mxu0 0.0
    %763 = vmatpush1.msra.mxu0 %v716
    %764 = vmatprep.subr.mxu0 0.0
    %765 = vmatpush1.msra.mxu0 %v717
    %766 = vmatprep.subr.mxu0 0.0
    %767 = vmatpush1.msra.mxu0 %v718
    %768 = vmatprep.subr.mxu0 0.0
    %769 = vmatpush1.msra.mxu0 %v719
    %770 = vmatprep.subr.mxu0 0.0
    %771 = vmatpush1.msra.mxu0 %v720
    %772 = vmatprep.subr.mxu0 0.0
    %773 = vmatpush1.msra.mxu0 %v721
    %774 = vmatprep.subr.mxu0 0.0
    %775 = vmatpush1.msra.mxu0 %v722
    %776 = vmatprep.subr.mxu0 0.0
    %777 = vmatpush1.msra.mxu0 %v723
    %778 = vmatprep.subr.mxu0 0.0
    %779 = vmatpush1.msra.mxu0 %v724
    %780 = vmatprep.subr.mxu0 0.0
    %781 = vmatpush1.msra.mxu0 %v725
    %782 = vmatprep.subr.mxu0 0.0
    %783 = vmatpush1.msra.mxu0 %v726
    %784 = vmatprep.subr.mxu0 0.0
    %785 = vmatpush1.msra.mxu0 %v727
    %786 = vmatprep.subr.mxu0 0.0
    %787 = vmatpush1.msra.mxu0 %v728
    %788 = vmatprep.subr.mxu0 0.0
    %789 = vmatpush1.msra.mxu0 %v729
    %790 = vmatprep.subr.mxu0 0.0
    %791 = vmatpush1.msra.mxu0 %v730
    %792 = vmatprep.subr.mxu0 0.0
    %793 = vmatpush1.msra.mxu0 %v731
    %794 = vmatprep.subr.mxu0 0.0
    %795 = vmatpush1.msra.mxu0 %v732
    %796 = vmatprep.subr.mxu0 0.0
    %797 = vmatpush1.msra.mxu0 %v733
    %798 = vmatprep.subr.mxu0 0.0
    %799 = vmatpush1.msra.mxu0 %v734
    %800 = vmatprep.subr.mxu0 0.0
    %801 = vmatpush1.msra.mxu0 %v735
    %802 = vmatprep.subr.mxu0 0.0
    %803 = vmatpush1.msra.mxu0 %v736
    %804 = vmatprep.subr.mxu0 0.0
    %805 = vmatpush1.msra.mxu0 %v737
    %806 = vmatprep.subr.mxu0 0.0
    %807 = vmatpush1.msra.mxu0 %v738
    %808 = vmatprep.subr.mxu0 0.0
    %809 = vmatpush1.msra.mxu0 %v739
    %810 = vmatprep.subr.mxu0 0.0
    %811 = vmatpush1.msra.mxu0 %v740
    %812 = vmatprep.mubr.f32.mxu0 %v706
    %813 = vmatmul.mubr.f32.gmra.mrb[0].mxu0 %v705
    %v814 = vpop.f32.mrb[0].mxu0
    %v815 = vadd.f32 %v746, %v814
    %v816 = vpop.f32.mrb[0].mxu0
    %817 = vmatprep.mubr.f32.mxu0 %v708
    %818 = vmatmul.mubr.f32.gmra.mrb[0].mxu0 %v707
    %v819 = vpop.f32.mrb[0].mxu0
    %v820 = vadd.f32 %v746, %v819
    %v821 = vpop.f32.mrb[0].mxu0
    %822 = vdwg.mxu0
    %v823 = vmax.f32 %v815, 0.0
    %v824 = vmax.f32 %v820, 0.0
    %v825 = vld [vmem:[%s7] sm:$0xff]
    %v826 = vld [vmem:[%s7 + $0x8] sm:$0xff]
    %v827 = vld [vmem:[%s7 + $0x10] sm:$0xff]
    %v828 = vld [vmem:[%s7 + $0x18] sm:$0xff]
    %v829 = vld [vmem:[%s8] sm:$0x1]
    %v831 = vlaneseq
    %v832 = vshrl.u32 %v831, 7
    %v833 = vsub.s32 0, %v832
    %v834 = vrot.slane %v829, %v833
    %v837 = vsel %vm121, %v823, 0
    %v840 = vsel %vm121, %v824, 0
    %842 = vmatprep.subr.mxu0 0.0
    %843 = vmatpush1.msra.mxu0 %v825
    %844 = vmatprep.subr.mxu0 0.0
    %845 = vmatpush1.msra.mxu0 %v826
    %846 = vmatprep.subr.mxu0 0.0
    %847 = vmatpush1.msra.mxu0 %v827
    %848 = vmatprep.subr.mxu0 0.0
    %849 = vmatpush1.msra.mxu0 %v828
    %850 = vmatprep.subr.mxu0 0.0
    %851 = vmatpush1.msra.mxu0 0.0
    %852 = vmatprep.subr.mxu0 0.0
    %853 = vmatpush1.msra.mxu0 0.0
    %854 = vmatprep.subr.mxu0 0.0
    %855 = vmatpush1.msra.mxu0 0.0
    %856 = vmatprep.subr.mxu0 0.0
    %857 = vmatpush1.msra.mxu0 0.0
    %858 = vmatprep.subr.mxu0 0.0
    %859 = vmatpush1.msra.mxu0 0.0
    %860 = vmatprep.subr.mxu0 0.0
    %861 = vmatpush1.msra.mxu0 0.0
    %862 = vmatprep.subr.mxu0 0.0
    %863 = vmatpush1.msra.mxu0 0.0
    %864 = vmatprep.subr.mxu0 0.0
    %865 = vmatpush1.msra.mxu0 0.0
    %866 = vmatprep.subr.mxu0 0.0
    %867 = vmatpush1.msra.mxu0 0.0
    %868 = vmatprep.subr.mxu0 0.0
    %869 = vmatpush1.msra.mxu0 0.0
    %870 = vmatprep.subr.mxu0 0.0
    %871 = vmatpush1.msra.mxu0 0.0
    %872 = vmatprep.subr.mxu0 0.0
    %873 = vmatpush1.msra.mxu0 0.0
    %874 = vmatprep.subr.mxu0 0.0
    %875 = vmatpush1.msra.mxu0 0.0
    %876 = vmatprep.subr.mxu0 0.0
    %877 = vmatpush1.msra.mxu0 0.0
    %878 = vmatprep.subr.mxu0 0.0
    %879 = vmatpush1.msra.mxu0 0.0
    %880 = vmatprep.subr.mxu0 0.0
    %881 = vmatpush1.msra.mxu0 0.0
    %882 = vmatprep.subr.mxu0 0.0
    %883 = vmatpush1.msra.mxu0 0.0
    %884 = vmatprep.subr.mxu0 0.0
    %885 = vmatpush1.msra.mxu0 0.0
    %886 = vmatprep.subr.mxu0 0.0
    %887 = vmatpush1.msra.mxu0 0.0
    %888 = vmatprep.subr.mxu0 0.0
    %889 = vmatpush1.msra.mxu0 0.0
    %890 = vmatprep.subr.mxu0 0.0
    %891 = vmatpush1.msra.mxu0 0.0
    %892 = vmatprep.subr.mxu0 0.0
    %893 = vmatpush1.msra.mxu0 0.0
    %894 = vmatprep.subr.mxu0 0.0
    %895 = vmatpush1.msra.mxu0 0.0
    %896 = vmatprep.subr.mxu0 0.0
    %897 = vmatpush1.msra.mxu0 0.0
    %898 = vmatprep.subr.mxu0 0.0
    %899 = vmatpush1.msra.mxu0 0.0
    %900 = vmatprep.subr.mxu0 0.0
    %901 = vmatpush1.msra.mxu0 0.0
    %902 = vmatprep.subr.mxu0 0.0
    %903 = vmatpush1.msra.mxu0 0.0
    %904 = vmatprep.subr.mxu0 0.0
    %905 = vmatpush1.msra.mxu0 0.0
    %906 = vmatprep.mubr.f32.mxu0 0.0
    %907 = vmatmul.mubr.f32.gmra.mrb[0].mxu0 %v837
    %v908 = vpop.f32.mrb[0].mxu0
    %v909 = vadd.f32 %v834, %v908
    %v910 = vpop.f32.mrb[0].mxu0
    %911 = vmatprep.mubr.f32.mxu0 0.0
    %912 = vmatmul.mubr.f32.gmra.mrb[0].mxu0 %v840
    %v913 = vpop.f32.mrb[0].mxu0
    %v914 = vadd.f32 %v834, %v913
    %v915 = vpop.f32.mrb[0].mxu0
    %916 = vdwg.mxu0
    %v917 = vlaneseq
    %v918 = vand.u32 %v917, 127
    %vm919 = vcmp.lt.s32.totalorder %v918, 3
    %v920 = vsel %vm919, %v909, -1e+30
    %v921 = vsel %vm919, %v914, -1e+30
    %922 = vmax.xlane.f32.xlu0 %v920
    %v923 = vpop.xlane.xlu0 %922
    %924 = vmax.xlane.f32.xlu0 %v921
    %v925 = vpop.xlane.xlu0 %924
    %v926 = vsub.f32 %v920, %v923
    %v927 = vsub.f32 %v921, %v925
    %v928 = vmul.f32 %v926, 1.442695
    %v929 = vpow.pop %v928
    %v930 = vmul.f32 %v927, 1.442695
    %v931 = vpow.pop %v930
    %932 = vadd.xlane.f32.xlu0 %v929
    %v933 = vpop.xlane.xlu0 %932
    %934 = vadd.xlane.f32.xlu0 %v931
    %v935 = vpop.xlane.xlu0 %934
    %v936 = vlog2.pop %v933
    %v937 = vmul.f32 %v936, 0.6931472
    %v938 = vlog2.pop %v935
    %v939 = vmul.f32 %v938, 0.6931472
    %v940 = vsub.f32 %v926, %v937
    %v941 = vsub.f32 %v927, %v939
    %942 = vst [vmem:[#allocation5] sm:$0xff] %v940
    %943 = vst [vmem:[#allocation5 + $0x8] sm:$0xff] %v941
    // Predicated region
    $region42: #{tpu_custom_call.1} parent=1 // pred_check
      _
    $region43: #{tpu_custom_call.1} parent=1 // pred_check_branch
      %945 = sbr.rel (0) target = $region45
    $region44: #{tpu_custom_call.1} parent=1 // pred_region
      %s947 = ssub.s32 256, 256
      %948 = vsyncadd [#allocation4], %s947
      %s949 = sshll.u32 [#allocation5], 4
      %s950 = int_to_ptr.vmem [resolvable:$true] %s949
      %955 = dma.vmem_to_hbm [thread:$0]  %s950, 256, %s9, [#allocation4], 128, 128, 8
    $region45: #{tpu_custom_call.1} parent=1 // pred_fallthru
      _
    // Predicated region
    $region46: #{tpu_custom_call.1} parent=1 // pred_check
      _
    $region47: #{tpu_custom_call.1} parent=1 // pred_check_branch
      %957 = sbr.rel (0) target = $region49
    $region48: #{tpu_custom_call.1} parent=1 // pred_region
      %958 = dma.done [#allocation4], 256
    $region49: #{tpu_custom_call.1} parent=1 // pred_fallthru
      _
    %959 = vsyncpa [#allocation3], 1
    %960 = vsyncpa [#allocation4], 1

</llo_original>
